<compile_context>
chip_gen: v7x
topology: tpu7x:2x2x1
jax: 0.10.0
libtpu: 0.0.40
codegen_flags: <defaults>
</compile_context>

<pallas_src>
import math

import jax
import jax.numpy as jnp
from jax.experimental import pallas as pl
from jax.experimental.pallas import tpu as pltpu

LANE = 128


def _round_up(x, m):
    return ((x + m - 1) // m) * m


def _cdiv(a, b):
    return (a + b - 1) // b


# --------------------------------------------------------------------------------------
# Kernel
# --------------------------------------------------------------------------------------
def generator_kernel(x_ref, w1_ref, b1_ref, w2_ref, b2_ref, w3_ref, b3_ref, o_ref):
    # Layer 1: Linear + ReLU  (Dropout -> identity, eval mode)
    x = x_ref[...].astype(w1_ref.dtype)
    h1 = jnp.dot(x, w1_ref[...], preferred_element_type=jnp.float32)
    h1 = jnp.maximum(h1 + b1_ref[...], 0.0)

    # Layer 2: Linear + ReLU  (Dropout -> identity, eval mode)
    h2 = jnp.dot(h1.astype(w2_ref.dtype), w2_ref[...], preferred_element_type=jnp.float32)
    h2 = jnp.maximum(h2 + b2_ref[...], 0.0)

    # Layer 3: Linear + Tanh (lane-dense padded output, stored as bf16)
    h3 = jnp.dot(h2.astype(w3_ref.dtype), w3_ref[...], preferred_element_type=jnp.float32)
    o_ref[...] = jnp.tanh(h3 + b3_ref[...]).astype(o_ref.dtype)


# --------------------------------------------------------------------------------------
# Parameter preparation (done once, outside the per-call path)
# --------------------------------------------------------------------------------------
def prepare_kernel_params(params, matmul_dtype=jnp.bfloat16):
    """Pad hidden/output dims to lane multiples and cast to kernel dtypes, once.

    Zero padding is math-preserving: ReLU(0 + 0) = 0 in the padded hidden columns and
    zero rows of W contribute nothing downstream.  Returns (prepared_params, out_dim).
    """
    w1, b1, w2, b2, w3, b3 = params          # w: [in, out], b: [1, out]
    d_noise, d_hidden = w1.shape
    out_dim = w3.shape[1]
    d_hid_p = _round_up(d_hidden, LANE)
    out_pad = _round_up(out_dim, LANE)

    w1p = jnp.pad(w1, ((0, 0), (0, d_hid_p - d_hidden)))
    b1p = jnp.pad(b1, ((0, 0), (0, d_hid_p - d_hidden)))
    w2p = jnp.pad(w2, ((0, d_hid_p - d_hidden), (0, d_hid_p - d_hidden)))
    b2p = jnp.pad(b2, ((0, 0), (0, d_hid_p - d_hidden)))
    w3p = jnp.pad(w3, ((0, d_hid_p - d_hidden), (0, out_pad - out_dim)))
    b3p = jnp.pad(b3, ((0, 0), (0, out_pad - out_dim)))

    prepared = (
        w1p.astype(matmul_dtype), b1p.astype(jnp.float32),
        w2p.astype(matmul_dtype), b2p.astype(jnp.float32),
        w3p.astype(matmul_dtype), b3p.astype(jnp.float32),
    )
    return prepared, out_dim


def unpad_output(out_padded, batch, out_dim):
    """Slice the padded kernel output back to [batch, out_dim] (consumer-side, lazy)."""
    return out_padded[:batch, :out_dim]


# --------------------------------------------------------------------------------------
# Wrapper
# --------------------------------------------------------------------------------------
def _choose_tile_b(B, max_tile_b=512, target_tiles=2):
    """>= `target_tiles` (even) grid steps when possible (v7x megacore), tile rows a
    multiple of 16 (bf16 sublane packing), padding waste < one tile."""
    n_tiles = max(target_tiles, _cdiv(B, max_tile_b))
    if n_tiles % 2:
        n_tiles += 1                       # even grid length -> no straggler tile on one TC
    tile_b = _round_up(max(_cdiv(B, n_tiles), 16), 16)
    return tile_b


def generator_forward(x, prepared_params, *, max_tile_b=512, out_dtype=jnp.bfloat16):
    """x: [B, d_noise] float32.  Returns the PADDED bf16 slab [B_pad, out_pad].

    Downstream consumers should slice lazily (see `unpad_output`); rows [B, B_pad) and
    columns [784, out_pad) are padding.
    """
    w1, b1, w2, b2, w3, b3 = prepared_params
    B, d_noise = x.shape
    d_hid_p = w1.shape[1]
    out_pad = w3.shape[1]

    # ---- batch tiling ----
    tile_b = _choose_tile_b(B, max_tile_b=max_tile_b)
    B_pad = _round_up(B, tile_b)
    if B_pad != B:
        x = jnp.pad(x, ((0, B_pad - B), (0, 0)))
    grid = (B_pad // tile_b,)

    # x / out tiles walk the batch axis; weights & biases stay VMEM-resident (constant index).
    x_spec = pl.BlockSpec((tile_b, d_noise), lambda i: (i, 0))
    resident = lambda shape: pl.BlockSpec(shape, lambda i: (0, 0))
    in_specs = [
        x_spec,
        resident(w1.shape), resident(b1.shape),
        resident(w2.shape), resident(b2.shape),
        resident(w3.shape), resident(b3.shape),
    ]
    out_spec = pl.BlockSpec((tile_b, out_pad), lambda i: (i, 0))

    # ---- VMEM budget from the actual footprint (safe on v7x's 64 MiB) ----
    out_itemsize = jnp.dtype(out_dtype).itemsize
    param_bytes = sum(int(a.size) * a.dtype.itemsize for a in prepared_params)
    vmem_needed = (
        2 * tile_b * d_noise * x.dtype.itemsize          # x, double-buffered
        + 2 * tile_b * out_pad * out_itemsize            # out, double-buffered
        + 2 * param_bytes                                # resident weights/biases (2 bufs)
        + tile_b * (2 * d_hid_p + out_pad) * 4           # f32 intermediates h1/h2/h3
    )
    vmem_limit = int(min(max(2 * vmem_needed, 16 * 1024 * 1024), 48 * 1024 * 1024))

    cost = pl.CostEstimate(
        flops=2 * B_pad * (d_noise * d_hid_p + d_hid_p * d_hid_p + d_hid_p * out_pad),
        transcendentals=B_pad * out_pad,
        bytes_accessed=(
            B_pad * d_noise * x.dtype.itemsize           # x (f32)
            + param_bytes                                # weights + biases
            + B_pad * out_pad * out_itemsize             # output (bf16)
        ),
    )

    return pl.pallas_call(
        generator_kernel,
        out_shape=jax.ShapeDtypeStruct((B_pad, out_pad), out_dtype),
        grid=grid,
        in_specs=in_specs,
        out_specs=out_spec,
        compiler_params=pltpu.CompilerParams(
            dimension_semantics=("parallel",),           # batch tiles shard across TCs (v7x)
            vmem_limit_bytes=vmem_limit,
        ),
        cost_estimate=cost,
    )(x, w1, b1, w2, b2, w3, b3)


# --------------------------------------------------------------------------------------
# Init (matches the PyTorch module) and pure-JAX reference
# --------------------------------------------------------------------------------------
def init_generator_params(key, d_noise, d_hidden, out_dim=28 * 28):
    """xavier_normal_ for weight matrices, uniform(0.1, 0.2) for biases (as in the spec)."""
    ks = jax.random.split(key, 6)

    def xavier_normal(k, fan_in, fan_out):
        std = math.sqrt(2.0 / (fan_in + fan_out))
        # stored as [in, out] (transpose of torch's [out, in]); xavier is symmetric.
        return std * jax.random.normal(k, (fan_in, fan_out), dtype=jnp.float32)

    def bias_uniform(k, n):
        return jax.random.uniform(k, (1, n), dtype=jnp.float32, minval=0.1, maxval=0.2)

    w1 = xavier_normal(ks[0], d_noise, d_hidden)
    b1 = bias_uniform(ks[1], d_hidden)
    w2 = xavier_normal(ks[2], d_hidden, d_hidden)
    b2 = bias_uniform(ks[3], d_hidden)
    w3 = xavier_normal(ks[4], d_hidden, out_dim)
    b3 = bias_uniform(ks[5], out_dim)
    return (w1, b1, w2, b2, w3, b3)


def reference_forward(x, params, matmul_dtype=jnp.float32):
    """Plain-JAX reference. matmul_dtype=bfloat16 mirrors the kernel's operand cast."""
    w1, b1, w2, b2, w3, b3 = params
    c = lambda a: a.astype(matmul_dtype)
    h = jnp.maximum(jnp.dot(c(x), c(w1), preferred_element_type=jnp.float32) + b1, 0.0)
    h = jnp.maximum(jnp.dot(c(h), c(w2), preferred_element_type=jnp.float32) + b2, 0.0)
    return jnp.tanh(jnp.dot(c(h), c(w3), preferred_element_type=jnp.float32) + b3)


# --------------------------------------------------------------------------------------
if __name__ == "__main__":
    B, d_noise, d_hidden = 8, 16, 32

    key = jax.random.PRNGKey(0)
    k_x, k_p = jax.random.split(key)

    x = jax.random.normal(k_x, (B, d_noise), dtype=jnp.float32)
    params = init_generator_params(k_p, d_noise, d_hidden)
    prepared, out_dim = prepare_kernel_params(params)

    out_padded = generator_forward(x, prepared)
    out_padded = jax.block_until_ready(out_padded)

    # Consumer-side lazy slice (test/verification only; kernel returns the padded slab).
    out = unpad_output(out_padded, B, out_dim).astype(jnp.float32)
    assert out.shape == (B, 28 * 28), out.shape

    # Check vs a reference using the same bf16 operand cast (output is bf16-rounded).
    ref_bf16 = reference_forward(x, params, matmul_dtype=jnp.bfloat16)
    assert jnp.allclose(out, ref_bf16, atol=2e-2, rtol=0.0), "mismatch vs bf16-matched reference"

    # Loose sanity check vs the pure-f32 reference (bf16 operand + output rounding).
    ref_f32 = reference_forward(x, params, matmul_dtype=jnp.float32)
    assert jnp.allclose(out, ref_f32, atol=6e-2, rtol=0.0), "mismatch vs f32 reference"

    print("KERNEL_OK")
</pallas_src>

<mosaic_0001>
module attributes {stable_mosaic.version = 11 : i64} {
  func.func @generator_kernel(%arg0: i32, %arg1: memref<16x16xf32, #tpu.memory_space<vmem>>, %arg2: memref<16x128xbf16, #tpu.memory_space<vmem>>, %arg3: memref<1x128xf32, #tpu.memory_space<vmem>>, %arg4: memref<128x128xbf16, #tpu.memory_space<vmem>>, %arg5: memref<1x128xf32, #tpu.memory_space<vmem>>, %arg6: memref<128x896xbf16, #tpu.memory_space<vmem>>, %arg7: memref<1x896xf32, #tpu.memory_space<vmem>>, %arg8: memref<16x896xbf16, #tpu.memory_space<vmem>>) attributes {dimension_semantics = [#tpu.dimension_semantics<parallel>], iteration_bounds = array<i64: 1>, scalar_prefetch = 0 : i64, scratch_operands = 0 : i64, tpu.core_type = #tpu.core_type<tc>, window_params = [{transform_indices = @transform_0, window_bounds = array<i64: 16, 16>}, {pipeline_mode = #tpu.pipeline_mode<synchronous>, transform_indices = @transform_1, window_bounds = array<i64: 16, 128>}, {pipeline_mode = #tpu.pipeline_mode<synchronous>, transform_indices = @transform_2, window_bounds = array<i64: 1, 128>}, {pipeline_mode = #tpu.pipeline_mode<synchronous>, transform_indices = @transform_3, window_bounds = array<i64: 128, 128>}, {pipeline_mode = #tpu.pipeline_mode<synchronous>, transform_indices = @transform_4, window_bounds = array<i64: 1, 128>}, {pipeline_mode = #tpu.pipeline_mode<synchronous>, transform_indices = @transform_5, window_bounds = array<i64: 128, 896>}, {pipeline_mode = #tpu.pipeline_mode<synchronous>, transform_indices = @transform_6, window_bounds = array<i64: 1, 896>}, {transform_indices = @transform_7, window_bounds = array<i64: 16, 896>}]} {
    %c0 = arith.constant 0 : index
    %c0_0 = arith.constant 0 : index
    %0 = vector.load %arg1[%c0, %c0_0] : memref<16x16xf32, #tpu.memory_space<vmem>>, vector<16x16xf32>
    %1 = arith.truncf %0 : vector<16x16xf32> to vector<16x16xbf16>
    %c0_1 = arith.constant 0 : index
    %c0_2 = arith.constant 0 : index
    %2 = vector.load %arg2[%c0_1, %c0_2] : memref<16x128xbf16, #tpu.memory_space<vmem>>, vector<16x128xbf16>
    %cst = arith.constant dense<0.000000e+00> : vector<16x128xf32>
    %3 = tpu.matmul %1, %2, %cst {dimension_numbers = #tpu.dot_dimension_numbers<[1], [0], [0], [1], [0, 0, 1, 1], [], []>} : vector<16x16xbf16>, vector<16x128xbf16>, vector<16x128xf32> -> vector<16x128xf32>
    %c0_3 = arith.constant 0 : index
    %c0_4 = arith.constant 0 : index
    %4 = vector.load %arg3[%c0_3, %c0_4] : memref<1x128xf32, #tpu.memory_space<vmem>>, vector<1x128xf32>
    %5 = vector.broadcast %4 : vector<1x128xf32> to vector<16x128xf32>
    %6 = arith.addf %3, %5 : vector<16x128xf32>
    %cst_5 = arith.constant 0.000000e+00 : f32
    %7 = vector.broadcast %cst_5 : f32 to vector<16x128xf32>
    %8 = arith.maximumf %6, %7 : vector<16x128xf32>
    %9 = arith.truncf %8 : vector<16x128xf32> to vector<16x128xbf16>
    %c0_6 = arith.constant 0 : index
    %c0_7 = arith.constant 0 : index
    %10 = vector.load %arg4[%c0_6, %c0_7] : memref<128x128xbf16, #tpu.memory_space<vmem>>, vector<128x128xbf16>
    %cst_8 = arith.constant dense<0.000000e+00> : vector<16x128xf32>
    %11 = tpu.matmul %9, %10, %cst_8 {dimension_numbers = #tpu.dot_dimension_numbers<[1], [0], [0], [1], [0, 0, 1, 1], [], []>} : vector<16x128xbf16>, vector<128x128xbf16>, vector<16x128xf32> -> vector<16x128xf32>
    %c0_9 = arith.constant 0 : index
    %c0_10 = arith.constant 0 : index
    %12 = vector.load %arg5[%c0_9, %c0_10] : memref<1x128xf32, #tpu.memory_space<vmem>>, vector<1x128xf32>
    %13 = vector.broadcast %12 : vector<1x128xf32> to vector<16x128xf32>
    %14 = arith.addf %11, %13 : vector<16x128xf32>
    %cst_11 = arith.constant 0.000000e+00 : f32
    %15 = vector.broadcast %cst_11 : f32 to vector<16x128xf32>
    %16 = arith.maximumf %14, %15 : vector<16x128xf32>
    %17 = arith.truncf %16 : vector<16x128xf32> to vector<16x128xbf16>
    %c0_12 = arith.constant 0 : index
    %c0_13 = arith.constant 0 : index
    %18 = vector.load %arg6[%c0_12, %c0_13] : memref<128x896xbf16, #tpu.memory_space<vmem>>, vector<128x896xbf16>
    %cst_14 = arith.constant dense<0.000000e+00> : vector<16x896xf32>
    %19 = tpu.matmul %17, %18, %cst_14 {dimension_numbers = #tpu.dot_dimension_numbers<[1], [0], [0], [1], [0, 0, 1, 1], [], []>} : vector<16x128xbf16>, vector<128x896xbf16>, vector<16x896xf32> -> vector<16x896xf32>
    %c0_15 = arith.constant 0 : index
    %c0_16 = arith.constant 0 : index
    %20 = vector.load %arg7[%c0_15, %c0_16] : memref<1x896xf32, #tpu.memory_space<vmem>>, vector<1x896xf32>
    %21 = vector.broadcast %20 : vector<1x896xf32> to vector<16x896xf32>
    %22 = arith.addf %19, %21 : vector<16x896xf32>
    %23 = math.tanh %22 : vector<16x896xf32>
    %24 = arith.truncf %23 : vector<16x896xf32> to vector<16x896xbf16>
    %c0_17 = arith.constant 0 : index
    %c0_18 = arith.constant 0 : index
    %25 = vector.load %arg8[%c0_17, %c0_18] : memref<16x896xbf16, #tpu.memory_space<vmem>>, vector<16x896xbf16>
    tpu.vector_store %arg8[%c0_17, %c0_18], %24 {strides = array<i32>} : memref<16x896xbf16, #tpu.memory_space<vmem>>, vector<16x896xbf16>,
    return
  }
  func.func @transform_0(%arg0: i32) -> (i32, i32) {
    %c0_i32 = arith.constant 0 : i32
    %c0_i32_0 = arith.constant 0 : i32
    return %arg0, %c0_i32 : i32, i32
  }
  func.func @transform_1(%arg0: i32) -> (i32, i32) {
    %c0_i32 = arith.constant 0 : i32
    %c0_i32_0 = arith.constant 0 : i32
    %c0_i32_1 = arith.constant 0 : i32
    return %c0_i32, %c0_i32_0 : i32, i32
  }
  func.func @transform_2(%arg0: i32) -> (i32, i32) {
    %c0_i32 = arith.constant 0 : i32
    %c0_i32_0 = arith.constant 0 : i32
    %c0_i32_1 = arith.constant 0 : i32
    return %c0_i32, %c0_i32_0 : i32, i32
  }
  func.func @transform_3(%arg0: i32) -> (i32, i32) {
    %c0_i32 = arith.constant 0 : i32
    %c0_i32_0 = arith.constant 0 : i32
    %c0_i32_1 = arith.constant 0 : i32
    return %c0_i32, %c0_i32_0 : i32, i32
  }
  func.func @transform_4(%arg0: i32) -> (i32, i32) {
    %c0_i32 = arith.constant 0 : i32
    %c0_i32_0 = arith.constant 0 : i32
    %c0_i32_1 = arith.constant 0 : i32
    return %c0_i32, %c0_i32_0 : i32, i32
  }
  func.func @transform_5(%arg0: i32) -> (i32, i32) {
    %c0_i32 = arith.constant 0 : i32
    %c0_i32_0 = arith.constant 0 : i32
    %c0_i32_1 = arith.constant 0 : i32
    return %c0_i32, %c0_i32_0 : i32, i32
  }
  func.func @transform_6(%arg0: i32) -> (i32, i32) {
    %c0_i32 = arith.constant 0 : i32
    %c0_i32_0 = arith.constant 0 : i32
    %c0_i32_1 = arith.constant 0 : i32
    return %c0_i32, %c0_i32_0 : i32, i32
  }
  func.func @transform_7(%arg0: i32) -> (i32, i32) {
    %c0_i32 = arith.constant 0 : i32
    %c0_i32_0 = arith.constant 0 : i32
    return %arg0, %c0_i32 : i32, i32
  }
}

</mosaic_0001>

<llo_original>
// kernel: tpu_custom_call.1
$region0: #{tpu_custom_call.1}
  #allocation0 [shape = 'u32[]', space=smem, size = 0x4, offset = 0x4, fixed_abs, tag = 'smem constant byte address 0x4 - core index']
  #allocation1 [shape = 'u32[144,128]{1,0:T(1,128)}', space=vmem, size = 0x12000, scoped, tag = 'internal scratch']
  %s0 = inlined_call_operand.hbm [shape: f32[16,16], index: 0, kind: input, shape index: {}]
  %s1 = inlined_call_operand.hbm [shape: bf16[16,128], index: 1, kind: input, shape index: {}]
  %s2 = inlined_call_operand.vmem [shape: f32[1,128], index: 2, kind: input, shape index: {}]
  %s3 = inlined_call_operand.hbm [shape: bf16[128,128], index: 3, kind: input, shape index: {}]
  %s4 = inlined_call_operand.vmem [shape: f32[1,128], index: 4, kind: input, shape index: {}]
  %s5 = inlined_call_operand.hbm [shape: bf16[128,896], index: 5, kind: input, shape index: {}]
  %s6 = inlined_call_operand.vmem [shape: f32[1,896], index: 6, kind: input, shape index: {}]
  %s7 = inlined_call_operand.hbm [shape: bf16[16,896], index: 7, kind: output, shape index: {}]
  %s8 = sld [smem:[#allocation0]]
  $region54: #{tpu_custom_call.1} parent=0
    _
  %s10 = ssub.s32 1, %s8
  %s11 = scalar_select 0, %s10, %s8
  $region1: #{tpu_custom_call.1} parent=0
    #allocation2 [shape = 'u8[8192]{0}', space=vmem, size = 0x2000, scoped, tag = 'input window, operand 0, single buffered']
    #allocation3 [shape = 's32[1]{0}', space=sflag, size = 0x4, scoped, tag = 'scoped memory for tpu_custom_call.1']
    #allocation4 [shape = 's32[1]{0}', space=sflag, size = 0x4, scoped, tag = 'scoped memory for tpu_custom_call.1']
    #allocation5 [shape = 'u8[4096]{0}', space=vmem, size = 0x1000, scoped, tag = 'input window, operand 1, single buffered']
    #allocation6 [shape = 's32[1]{0}', space=sflag, size = 0x4, scoped, tag = 'scoped memory for tpu_custom_call.1']
    #allocation7 [shape = 'u8[32768]{0}', space=vmem, size = 0x8000, scoped, tag = 'input window, operand 3, single buffered']
    #allocation8 [shape = 'u8[229376]{0}', space=vmem, size = 0x38000, scoped, tag = 'input window, operand 5, single buffered']
    #allocation9 [shape = 's32[1]{0}', space=sflag, size = 0x4, scoped, tag = 'scoped memory for tpu_custom_call.1']
    #allocation10 [shape = 'u8[28672]{0}', space=vmem, size = 0x7000, scoped, tag = 'output window, operand 0, single buffered']
    %12 = vsyncpa [#allocation3], 0
    %13 = vsyncpa [#allocation6], 0
    %14 = vsyncpa [#allocation9], 0
    %15 = vsyncpa [#allocation4], 0
    // Predicated region
    $region2: #{tpu_custom_call.1} parent=1 // pred_check
      _
    $region3: #{tpu_custom_call.1} parent=1 // pred_check_branch
      %17 = sbr.rel (0) target = $region5
    $region4: #{tpu_custom_call.1} parent=1 // pred_region
      %s19 = ssub.s32 256, 256
      %20 = vsyncadd [#allocation3], %s19
      %s21 = sshll.u32 [#allocation2], 4
      %s22 = int_to_ptr.vmem [resolvable:$true] %s21
      %27 = dma.hbm_to_vmem [thread:$0]  %s0, 256, %s22, [#allocation3], 128, 128, 8
    $region5: #{tpu_custom_call.1} parent=1 // pred_fallthru
      _
    // Predicated region
    $region6: #{tpu_custom_call.1} parent=1 // pred_check
      _
    $region7: #{tpu_custom_call.1} parent=1 // pred_check_branch
      %29 = sbr.rel (0) target = $region9
    $region8: #{tpu_custom_call.1} parent=1 // pred_region
      %s31 = ssub.s32 128, 128
      %32 = vsyncadd [#allocation6], %s31
      %s33 = sshll.u32 [#allocation5], 4
      %s34 = int_to_ptr.vmem [resolvable:$true] %s33
      %39 = dma.hbm_to_vmem [thread:$0]  %s1, 128, %s34, [#allocation6], 64, 64, 4
    $region9: #{tpu_custom_call.1} parent=1 // pred_fallthru
      _
    // Predicated region
    $region10: #{tpu_custom_call.1} parent=1 // pred_check
      _
    $region11: #{tpu_custom_call.1} parent=1 // pred_check_branch
      %41 = sbr.rel (0) target = $region13
    $region12: #{tpu_custom_call.1} parent=1 // pred_region
      _
    $region13: #{tpu_custom_call.1} parent=1 // pred_fallthru
      _
    // Predicated region
    $region14: #{tpu_custom_call.1} parent=1 // pred_check
      _
    $region15: #{tpu_custom_call.1} parent=1 // pred_check_branch
      %43 = sbr.rel (0) target = $region17
    $region16: #{tpu_custom_call.1} parent=1 // pred_region
      %s45 = ssub.s32 1024, 1024
      %46 = vsyncadd [#allocation6], %s45
      %s47 = sshll.u32 [#allocation7], 4
      %s48 = int_to_ptr.vmem [resolvable:$true] %s47
      %53 = dma.hbm_to_vmem [thread:$0]  %s3, 1024, %s48, [#allocation6], 64, 64, 4
    $region17: #{tpu_custom_call.1} parent=1 // pred_fallthru
      _
    // Predicated region
    $region18: #{tpu_custom_call.1} parent=1 // pred_check
      _
    $region19: #{tpu_custom_call.1} parent=1 // pred_check_branch
      %55 = sbr.rel (0) target = $region21
    $region20: #{tpu_custom_call.1} parent=1 // pred_region
      _
    $region21: #{tpu_custom_call.1} parent=1 // pred_fallthru
      _
    // Predicated region
    $region22: #{tpu_custom_call.1} parent=1 // pred_check
      _
    $region23: #{tpu_custom_call.1} parent=1 // pred_check_branch
      %57 = sbr.rel (0) target = $region25
    $region24: #{tpu_custom_call.1} parent=1 // pred_region
      %s59 = ssub.s32 7168, 7168
      %60 = vsyncadd [#allocation9], %s59
      %s61 = sshll.u32 [#allocation8], 4
      %s62 = int_to_ptr.vmem [resolvable:$true] %s61
      %67 = dma.hbm_to_vmem [thread:$0]  %s5, 7168, %s62, [#allocation9], 448, 448, 28
    $region25: #{tpu_custom_call.1} parent=1 // pred_fallthru
      _
    // Predicated region
    $region26: #{tpu_custom_call.1} parent=1 // pred_check
      _
    $region27: #{tpu_custom_call.1} parent=1 // pred_check_branch
      %69 = sbr.rel (0) target = $region29
    $region28: #{tpu_custom_call.1} parent=1 // pred_region
      _
    $region29: #{tpu_custom_call.1} parent=1 // pred_fallthru
      _
    // Predicated region
    $region30: #{tpu_custom_call.1} parent=1 // pred_check
      _
    $region31: #{tpu_custom_call.1} parent=1 // pred_check_branch
      %71 = sbr.rel (0) target = $region33
    $region32: #{tpu_custom_call.1} parent=1 // pred_region
      %72 = dma.done [#allocation3], 256
    $region33: #{tpu_custom_call.1} parent=1 // pred_fallthru
      _
    // Predicated region
    $region34: #{tpu_custom_call.1} parent=1 // pred_check
      _
    $region35: #{tpu_custom_call.1} parent=1 // pred_check_branch
      %74 = sbr.rel (0) target = $region37
    $region36: #{tpu_custom_call.1} parent=1 // pred_region
      %75 = dma.done [#allocation6], 128
    $region37: #{tpu_custom_call.1} parent=1 // pred_fallthru
      _
    // Predicated region
    $region38: #{tpu_custom_call.1} parent=1 // pred_check
      _
    $region39: #{tpu_custom_call.1} parent=1 // pred_check_branch
      %77 = sbr.rel (0) target = $region41
    $region40: #{tpu_custom_call.1} parent=1 // pred_region
      %78 = dma.done [#allocation6], 1024
    $region41: #{tpu_custom_call.1} parent=1 // pred_fallthru
      _
    // Predicated region
    $region42: #{tpu_custom_call.1} parent=1 // pred_check
      _
    $region43: #{tpu_custom_call.1} parent=1 // pred_check_branch
      %80 = sbr.rel (0) target = $region45
    $region44: #{tpu_custom_call.1} parent=1 // pred_region
      %81 = dma.done [#allocation9], 7168
    $region45: #{tpu_custom_call.1} parent=1 // pred_fallthru
      _
    %v83 = vld [vmem:[#allocation2] sm:$0xff]
    %v84 = vld [vmem:[#allocation2 + $0x8] sm:$0xff]
    %v85 = vpack.c.bf16 %v84, %v83
    %v86 = vld [vmem:[#allocation5] sm:$0xf]
    %v87 = vld [vmem:[#allocation5 + $0x4] sm:$0xf]
    %v88 = vld [vmem:[%s2] sm:$0x1]
    %v90 = vlaneseq
    %v91 = vshrl.u32 %v90, 7
    %v92 = vsub.s32 0, %v91
    %v93 = vrot.slane %v88, %v92
    %v97 = vunpack.c.l.b16 %v86
    %v98 = vunpack.c.l.b16 %v87
    %v99 = vpack.c.b16 %v98, %v97
    %vm101 = vcmask 130048
    %v103 = vsel %vm101, %v85, 0
    %105 = vmatprep.subr.bf16.mxu0 0
    %106 = vmatpush1.bf16.msra.mxu0 %v99
    %107 = vmatprep.subr.bf16.mxu0 0
    %108 = vmatpush1.bf16.msra.mxu0 0
    %109 = vmatprep.subr.bf16.mxu0 0
    %110 = vmatpush1.bf16.msra.mxu0 0
    %111 = vmatprep.subr.bf16.mxu0 0
    %112 = vmatpush1.bf16.msra.mxu0 0
    %113 = vmatprep.subr.bf16.mxu0 0
    %114 = vmatpush1.bf16.msra.mxu0 0
    %115 = vmatprep.subr.bf16.mxu0 0
    %116 = vmatpush1.bf16.msra.mxu0 0
    %117 = vmatprep.subr.bf16.mxu0 0
    %118 = vmatpush1.bf16.msra.mxu0 0
    %119 = vmatprep.subr.bf16.mxu0 0
    %120 = vmatpush1.bf16.msra.mxu0 0
    %121 = vmatprep.subr.bf16.mxu0 0
    %122 = vmatpush1.bf16.msra.mxu0 0
    %123 = vmatprep.subr.bf16.mxu0 0
    %124 = vmatpush1.bf16.msra.mxu0 0
    %125 = vmatprep.subr.bf16.mxu0 0
    %126 = vmatpush1.bf16.msra.mxu0 0
    %127 = vmatprep.subr.bf16.mxu0 0
    %128 = vmatpush1.bf16.msra.mxu0 0
    %129 = vmatprep.subr.bf16.mxu0 0
    %130 = vmatpush1.bf16.msra.mxu0 0
    %131 = vmatprep.subr.bf16.mxu0 0
    %132 = vmatpush1.bf16.msra.mxu0 0
    %133 = vmatprep.subr.bf16.mxu0 0
    %134 = vmatpush1.bf16.msra.mxu0 0
    %135 = vmatprep.subr.bf16.mxu0 0
    %136 = vmatpush1.bf16.msra.mxu0 0
    %137 = vmatprep.mubr.bf16.mxu0 0
    %138 = vmatmul.mubr.bf16.gmra.mrb[0].mxu0 %v103
    %v139 = vpop.f32.mrb[0].mxu0
    %v140 = vadd.f32 %v93, %v139
    %v141 = vpop.f32.mrb[0].mxu0
    %v142 = vpop.f32.mrb[0].mxu0
    %v143 = vadd.f32 %v93, %v142
    %v144 = vpop.f32.mrb[0].mxu0
    %145 = vdwg.mxu0
    %v146 = vmax.f32 %v140, 0.0
    %v147 = vmax.f32 %v143, 0.0
    %v148 = vpack.c.bf16 %v147, %v146
    %v149 = vld [vmem:[#allocation7] sm:$0xf]
    %v150 = vld [vmem:[#allocation7 + $0x4] sm:$0xf]
    %v151 = vld [vmem:[#allocation7 + $0x8] sm:$0xf]
    %v152 = vld [vmem:[#allocation7 + $0xc] sm:$0xf]
    %v153 = vld [vmem:[#allocation7 + $0x10] sm:$0xf]
    %v154 = vld [vmem:[#allocation7 + $0x14] sm:$0xf]
    %v155 = vld [vmem:[#allocation7 + $0x18] sm:$0xf]
    %v156 = vld [vmem:[#allocation7 + $0x1c] sm:$0xf]
    %v157 = vld [vmem:[#allocation7 + $0x20] sm:$0xf]
    %v158 = vld [vmem:[#allocation7 + $0x24] sm:$0xf]
    %v159 = vld [vmem:[#allocation7 + $0x28] sm:$0xf]
    %v160 = vld [vmem:[#allocation7 + $0x2c] sm:$0xf]
    %v161 = vld [vmem:[#allocation7 + $0x30] sm:$0xf]
    %v162 = vld [vmem:[#allocation7 + $0x34] sm:$0xf]
    %v163 = vld [vmem:[#allocation7 + $0x38] sm:$0xf]
    %v164 = vld [vmem:[#allocation7 + $0x3c] sm:$0xf]
    %v165 = vld [vmem:[%s4] sm:$0x1]
    %v167 = vlaneseq
    %v168 = vshrl.u32 %v167, 7
    %v169 = vsub.s32 0, %v168
    %v170 = vrot.slane %v165, %v169
    %v188 = vunpack.c.l.b16 %v149
    %v189 = vunpack.c.l.b16 %v150
    %v190 = vunpack.c.l.b16 %v151
    %v191 = vunpack.c.l.b16 %v152
    %v192 = vunpack.c.l.b16 %v153
    %v193 = vunpack.c.l.b16 %v154
    %v194 = vunpack.c.l.b16 %v155
    %v195 = vunpack.c.l.b16 %v156
    %v196 = vunpack.c.l.b16 %v157
    %v197 = vunpack.c.l.b16 %v158
    %v198 = vunpack.c.l.b16 %v159
    %v199 = vunpack.c.l.b16 %v160
    %v200 = vunpack.c.l.b16 %v161
    %v201 = vunpack.c.l.b16 %v162
    %v202 = vunpack.c.l.b16 %v163
    %v203 = vunpack.c.l.b16 %v164
    %v204 = vpack.c.b16 %v189, %v188
    %v205 = vpack.c.b16 %v191, %v190
    %v206 = vpack.c.b16 %v193, %v192
    %v207 = vpack.c.b16 %v195, %v194
    %v208 = vpack.c.b16 %v197, %v196
    %v209 = vpack.c.b16 %v199, %v198
    %v210 = vpack.c.b16 %v201, %v200
    %v211 = vpack.c.b16 %v203, %v202
    %220 = vmatprep.subr.bf16.mxu0 0
    %221 = vmatpush1.bf16.msra.mxu0 %v204
    %222 = vmatprep.subr.bf16.mxu0 0
    %223 = vmatpush1.bf16.msra.mxu0 %v205
    %224 = vmatprep.subr.bf16.mxu0 0
    %225 = vmatpush1.bf16.msra.mxu0 %v206
    %226 = vmatprep.subr.bf16.mxu0 0
    %227 = vmatpush1.bf16.msra.mxu0 %v207
    %228 = vmatprep.subr.bf16.mxu0 0
    %229 = vmatpush1.bf16.msra.mxu0 %v208
    %230 = vmatprep.subr.bf16.mxu0 0
    %231 = vmatpush1.bf16.msra.mxu0 %v209
    %232 = vmatprep.subr.bf16.mxu0 0
    %233 = vmatpush1.bf16.msra.mxu0 %v210
    %234 = vmatprep.subr.bf16.mxu0 0
    %235 = vmatpush1.bf16.msra.mxu0 %v211
    %236 = vmatprep.subr.bf16.mxu0 0
    %237 = vmatpush1.bf16.msra.mxu0 0
    %238 = vmatprep.subr.bf16.mxu0 0
    %239 = vmatpush1.bf16.msra.mxu0 0
    %240 = vmatprep.subr.bf16.mxu0 0
    %241 = vmatpush1.bf16.msra.mxu0 0
    %242 = vmatprep.subr.bf16.mxu0 0
    %243 = vmatpush1.bf16.msra.mxu0 0
    %244 = vmatprep.subr.bf16.mxu0 0
    %245 = vmatpush1.bf16.msra.mxu0 0
    %246 = vmatprep.subr.bf16.mxu0 0
    %247 = vmatpush1.bf16.msra.mxu0 0
    %248 = vmatprep.subr.bf16.mxu0 0
    %249 = vmatpush1.bf16.msra.mxu0 0
    %250 = vmatprep.subr.bf16.mxu0 0
    %251 = vmatpush1.bf16.msra.mxu0 0
    %252 = vmatprep.mubr.bf16.mxu0 0
    %253 = vmatmul.mubr.bf16.gmra.mrb[0].mxu0 %v148
    %v254 = vpop.f32.mrb[0].mxu0
    %v255 = vadd.f32 %v170, %v254
    %v256 = vpop.f32.mrb[0].mxu0
    %v257 = vpop.f32.mrb[0].mxu0
    %v258 = vadd.f32 %v170, %v257
    %v259 = vpop.f32.mrb[0].mxu0
    %260 = vdwg.mxu0
    %v261 = vmax.f32 %v255, 0.0
    %v262 = vmax.f32 %v258, 0.0
    %v263 = vpack.c.bf16 %v262, %v261
    %v264 = vld [vmem:[#allocation8] sm:$0xff]
    %v265 = vld [vmem:[#allocation8 + $0x8] sm:$0xff]
    %v266 = vld [vmem:[#allocation8 + $0x10] sm:$0xff]
    %v267 = vld [vmem:[#allocation8 + $0x18] sm:$0xf]
    %v268 = vld [vmem:[#allocation8 + $0x1c] sm:$0xff]
    %v269 = vld [vmem:[#allocation8 + $0x24] sm:$0xff]
    %v270 = vld [vmem:[#allocation8 + $0x2c] sm:$0xff]
    %v271 = vld [vmem:[#allocation8 + $0x34] sm:$0xf]
    %v272 = vld [vmem:[#allocation8 + $0x38] sm:$0xff]
    %v273 = vld [vmem:[#allocation8 + $0x40] sm:$0xff]
    %v274 = vld [vmem:[#allocation8 + $0x48] sm:$0xff]
    %v275 = vld [vmem:[#allocation8 + $0x50] sm:$0xf]
    %v276 = vld [vmem:[#allocation8 + $0x54] sm:$0xff]
    %v277 = vld [vmem:[#allocation8 + $0x5c] sm:$0xff]
    %v278 = vld [vmem:[#allocation8 + $0x64] sm:$0xff]
    %v279 = vld [vmem:[#allocation8 + $0x6c] sm:$0xf]
    %v280 = vld [vmem:[#allocation8 + $0x70] sm:$0xff]
    %v281 = vld [vmem:[#allocation8 + $0x78] sm:$0xff]
    %v282 = vld [vmem:[#allocation8 + $0x80] sm:$0xff]
    %v283 = vld [vmem:[#allocation8 + $0x88] sm:$0xf]
    %v284 = vld [vmem:[#allocation8 + $0x8c] sm:$0xff]
    %v285 = vld [vmem:[#allocation8 + $0x94] sm:$0xff]
    %v286 = vld [vmem:[#allocation8 + $0x9c] sm:$0xff]
    %v287 = vld [vmem:[#allocation8 + $0xa4] sm:$0xf]
    %v288 = vld [vmem:[#allocation8 + $0xa8] sm:$0xff]
    %v289 = vld [vmem:[#allocation8 + $0xb0] sm:$0xff]
    %v290 = vld [vmem:[#allocation8 + $0xb8] sm:$0xff]
    %v291 = vld [vmem:[#allocation8 + $0xc0] sm:$0xf]
    %v292 = vld [vmem:[#allocation8 + $0xc4] sm:$0xff]
    %v293 = vld [vmem:[#allocation8 + $0xcc] sm:$0xff]
    %v294 = vld [vmem:[#allocation8 + $0xd4] sm:$0xff]
    %v295 = vld [vmem:[#allocation8 + $0xdc] sm:$0xf]
    %v296 = vld [vmem:[#allocation8 + $0xe0] sm:$0xff]
    %v297 = vld [vmem:[#allocation8 + $0xe8] sm:$0xff]
    %v298 = vld [vmem:[#allocation8 + $0xf0] sm:$0xff]
    %v299 = vld [vmem:[#allocation8 + $0xf8] sm:$0xf]
    %v300 = vld [vmem:[#allocation8 + $0xfc] sm:$0xff]
    %v301 = vld [vmem:[#allocation8 + $0x104] sm:$0xff]
    %v302 = vld [vmem:[#allocation8 + $0x10c] sm:$0xff]
    %v303 = vld [vmem:[#allocation8 + $0x114] sm:$0xf]
    %v304 = vld [vmem:[#allocation8 + $0x118] sm:$0xff]
    %v305 = vld [vmem:[#allocation8 + $0x120] sm:$0xff]
    %v306 = vld [vmem:[#allocation8 + $0x128] sm:$0xff]
    %v307 = vld [vmem:[#allocation8 + $0x130] sm:$0xf]
    %v308 = vld [vmem:[#allocation8 + $0x134] sm:$0xff]
    %v309 = vld [vmem:[#allocation8 + $0x13c] sm:$0xff]
    %v310 = vld [vmem:[#allocation8 + $0x144] sm:$0xff]
    %v311 = vld [vmem:[#allocation8 + $0x14c] sm:$0xf]
    %v312 = vld [vmem:[#allocation8 + $0x150] sm:$0xff]
    %v313 = vld [vmem:[#allocation8 + $0x158] sm:$0xff]
    %v314 = vld [vmem:[#allocation8 + $0x160] sm:$0xff]
    %v315 = vld [vmem:[#allocation8 + $0x168] sm:$0xf]
    %v316 = vld [vmem:[#allocation8 + $0x16c] sm:$0xff]
    %v317 = vld [vmem:[#allocation8 + $0x174] sm:$0xff]
    %v318 = vld [vmem:[#allocation8 + $0x17c] sm:$0xff]
    %v319 = vld [vmem:[#allocation8 + $0x184] sm:$0xf]
    %v320 = vld [vmem:[#allocation8 + $0x188] sm:$0xff]
    %v321 = vld [vmem:[#allocation8 + $0x190] sm:$0xff]
    %v322 = vld [vmem:[#allocation8 + $0x198] sm:$0xff]
    %v323 = vld [vmem:[#allocation8 + $0x1a0] sm:$0xf]
    %v324 = vld [vmem:[#allocation8 + $0x1a4] sm:$0xff]
    %v325 = vld [vmem:[#allocation8 + $0x1ac] sm:$0xff]
    %v326 = vld [vmem:[#allocation8 + $0x1b4] sm:$0xff]
    %v327 = vld [vmem:[#allocation8 + $0x1bc] sm:$0xf]
    %v328 = vld [vmem:[%s6] sm:$0xff]
    %v330 = vlaneseq
    %v331 = vshrl.u32 %v330, 7
    %v332 = vsub.s32 0, %v331
    %v333 = vrot.slane %v328, %v332
    %v334 = vlaneseq
    %v335 = vshrl.u32 %v334, 7
    %v336 = vsub.s32 1, %v335
    %v337 = vrot.slane %v328, %v336
    %v338 = vlaneseq
    %v339 = vshrl.u32 %v338, 7
    %v340 = vsub.s32 2, %v339
    %v341 = vrot.slane %v328, %v340
    %v342 = vlaneseq
    %v343 = vshrl.u32 %v342, 7
    %v344 = vsub.s32 3, %v343
    %v345 = vrot.slane %v328, %v344
    %v346 = vlaneseq
    %v347 = vshrl.u32 %v346, 7
    %v348 = vsub.s32 4, %v347
    %v349 = vrot.slane %v328, %v348
    %v350 = vlaneseq
    %v351 = vshrl.u32 %v350, 7
    %v352 = vsub.s32 5, %v351
    %v353 = vrot.slane %v328, %v352
    %v354 = vlaneseq
    %v355 = vshrl.u32 %v354, 7
    %v356 = vsub.s32 6, %v355
    %v357 = vrot.slane %v328, %v356
    %v429 = vunpack.c.l.b16 %v264
    %v430 = vunpack.c.h.b16 %v264
    %v431 = vunpack.c.l.b16 %v265
    %v432 = vunpack.c.h.b16 %v265
    %v433 = vunpack.c.l.b16 %v266
    %v434 = vunpack.c.h.b16 %v266
    %v435 = vunpack.c.l.b16 %v267
    %v436 = vunpack.c.l.b16 %v268
    %v437 = vunpack.c.h.b16 %v268
    %v438 = vunpack.c.l.b16 %v269
    %v439 = vunpack.c.h.b16 %v269
    %v440 = vunpack.c.l.b16 %v270
    %v441 = vunpack.c.h.b16 %v270
    %v442 = vunpack.c.l.b16 %v271
    %v443 = vunpack.c.l.b16 %v272
    %v444 = vunpack.c.h.b16 %v272
    %v445 = vunpack.c.l.b16 %v273
    %v446 = vunpack.c.h.b16 %v273
    %v447 = vunpack.c.l.b16 %v274
    %v448 = vunpack.c.h.b16 %v274
    %v449 = vunpack.c.l.b16 %v275
    %v450 = vunpack.c.l.b16 %v276
    %v451 = vunpack.c.h.b16 %v276
    %v452 = vunpack.c.l.b16 %v277
    %v453 = vunpack.c.h.b16 %v277
    %v454 = vunpack.c.l.b16 %v278
    %v455 = vunpack.c.h.b16 %v278
    %v456 = vunpack.c.l.b16 %v279
    %v457 = vunpack.c.l.b16 %v280
    %v458 = vunpack.c.h.b16 %v280
    %v459 = vunpack.c.l.b16 %v281
    %v460 = vunpack.c.h.b16 %v281
    %v461 = vunpack.c.l.b16 %v282
    %v462 = vunpack.c.h.b16 %v282
    %v463 = vunpack.c.l.b16 %v283
    %v464 = vunpack.c.l.b16 %v284
    %v465 = vunpack.c.h.b16 %v284
    %v466 = vunpack.c.l.b16 %v285
    %v467 = vunpack.c.h.b16 %v285
    %v468 = vunpack.c.l.b16 %v286
    %v469 = vunpack.c.h.b16 %v286
    %v470 = vunpack.c.l.b16 %v287
    %v471 = vunpack.c.l.b16 %v288
    %v472 = vunpack.c.h.b16 %v288
    %v473 = vunpack.c.l.b16 %v289
    %v474 = vunpack.c.h.b16 %v289
    %v475 = vunpack.c.l.b16 %v290
    %v476 = vunpack.c.h.b16 %v290
    %v477 = vunpack.c.l.b16 %v291
    %v478 = vunpack.c.l.b16 %v292
    %v479 = vunpack.c.h.b16 %v292
    %v480 = vunpack.c.l.b16 %v293
    %v481 = vunpack.c.h.b16 %v293
    %v482 = vunpack.c.l.b16 %v294
    %v483 = vunpack.c.h.b16 %v294
    %v484 = vunpack.c.l.b16 %v295
    %v485 = vunpack.c.l.b16 %v296
    %v486 = vunpack.c.h.b16 %v296
    %v487 = vunpack.c.l.b16 %v297
    %v488 = vunpack.c.h.b16 %v297
    %v489 = vunpack.c.l.b16 %v298
    %v490 = vunpack.c.h.b16 %v298
    %v491 = vunpack.c.l.b16 %v299
    %v492 = vunpack.c.l.b16 %v300
    %v493 = vunpack.c.h.b16 %v300
    %v494 = vunpack.c.l.b16 %v301
    %v495 = vunpack.c.h.b16 %v301
    %v496 = vunpack.c.l.b16 %v302
    %v497 = vunpack.c.h.b16 %v302
    %v498 = vunpack.c.l.b16 %v303
    %v499 = vunpack.c.l.b16 %v304
    %v500 = vunpack.c.h.b16 %v304
    %v501 = vunpack.c.l.b16 %v305
    %v502 = vunpack.c.h.b16 %v305
    %v503 = vunpack.c.l.b16 %v306
    %v504 = vunpack.c.h.b16 %v306
    %v505 = vunpack.c.l.b16 %v307
    %v506 = vunpack.c.l.b16 %v308
    %v507 = vunpack.c.h.b16 %v308
    %v508 = vunpack.c.l.b16 %v309
    %v509 = vunpack.c.h.b16 %v309
    %v510 = vunpack.c.l.b16 %v310
    %v511 = vunpack.c.h.b16 %v310
    %v512 = vunpack.c.l.b16 %v311
    %v513 = vunpack.c.l.b16 %v312
    %v514 = vunpack.c.h.b16 %v312
    %v515 = vunpack.c.l.b16 %v313
    %v516 = vunpack.c.h.b16 %v313
    %v517 = vunpack.c.l.b16 %v314
    %v518 = vunpack.c.h.b16 %v314
    %v519 = vunpack.c.l.b16 %v315
    %v520 = vunpack.c.l.b16 %v316
    %v521 = vunpack.c.h.b16 %v316
    %v522 = vunpack.c.l.b16 %v317
    %v523 = vunpack.c.h.b16 %v317
    %v524 = vunpack.c.l.b16 %v318
    %v525 = vunpack.c.h.b16 %v318
    %v526 = vunpack.c.l.b16 %v319
    %v527 = vunpack.c.l.b16 %v320
    %v528 = vunpack.c.h.b16 %v320
    %v529 = vunpack.c.l.b16 %v321
    %v530 = vunpack.c.h.b16 %v321
    %v531 = vunpack.c.l.b16 %v322
    %v532 = vunpack.c.h.b16 %v322
    %v533 = vunpack.c.l.b16 %v323
    %v534 = vunpack.c.l.b16 %v324
    %v535 = vunpack.c.h.b16 %v324
    %v536 = vunpack.c.l.b16 %v325
    %v537 = vunpack.c.h.b16 %v325
    %v538 = vunpack.c.l.b16 %v326
    %v539 = vunpack.c.h.b16 %v326
    %v540 = vunpack.c.l.b16 %v327
    %v541 = vpack.c.b16 %v436, %v429
    %v542 = vpack.c.b16 %v437, %v430
    %v543 = vpack.c.b16 %v438, %v431
    %v544 = vpack.c.b16 %v439, %v432
    %v545 = vpack.c.b16 %v440, %v433
    %v546 = vpack.c.b16 %v441, %v434
    %v547 = vpack.c.b16 %v442, %v435
    %v548 = vpack.c.b16 %v450, %v443
    %v549 = vpack.c.b16 %v451, %v444
    %v550 = vpack.c.b16 %v452, %v445
    %v551 = vpack.c.b16 %v453, %v446
    %v552 = vpack.c.b16 %v454, %v447
    %v553 = vpack.c.b16 %v455, %v448
    %v554 = vpack.c.b16 %v456, %v449
    %v555 = vpack.c.b16 %v464, %v457
    %v556 = vpack.c.b16 %v465, %v458
    %v557 = vpack.c.b16 %v466, %v459
    %v558 = vpack.c.b16 %v467, %v460
    %v559 = vpack.c.b16 %v468, %v461
    %v560 = vpack.c.b16 %v469, %v462
    %v561 = vpack.c.b16 %v470, %v463
    %v562 = vpack.c.b16 %v478, %v471
    %v563 = vpack.c.b16 %v479, %v472
    %v564 = vpack.c.b16 %v480, %v473
    %v565 = vpack.c.b16 %v481, %v474
    %v566 = vpack.c.b16 %v482, %v475
    %v567 = vpack.c.b16 %v483, %v476
    %v568 = vpack.c.b16 %v484, %v477
    %v569 = vpack.c.b16 %v492, %v485
    %v570 = vpack.c.b16 %v493, %v486
    %v571 = vpack.c.b16 %v494, %v487
    %v572 = vpack.c.b16 %v495, %v488
    %v573 = vpack.c.b16 %v496, %v489
    %v574 = vpack.c.b16 %v497, %v490
    %v575 = vpack.c.b16 %v498, %v491
    %v576 = vpack.c.b16 %v506, %v499
    %v577 = vpack.c.b16 %v507, %v500
    %v578 = vpack.c.b16 %v508, %v501
    %v579 = vpack.c.b16 %v509, %v502
    %v580 = vpack.c.b16 %v510, %v503
    %v581 = vpack.c.b16 %v511, %v504
    %v582 = vpack.c.b16 %v512, %v505
    %v583 = vpack.c.b16 %v520, %v513
    %v584 = vpack.c.b16 %v521, %v514
    %v585 = vpack.c.b16 %v522, %v515
    %v586 = vpack.c.b16 %v523, %v516
    %v587 = vpack.c.b16 %v524, %v517
    %v588 = vpack.c.b16 %v525, %v518
    %v589 = vpack.c.b16 %v526, %v519
    %v590 = vpack.c.b16 %v534, %v527
    %v591 = vpack.c.b16 %v535, %v528
    %v592 = vpack.c.b16 %v536, %v529
    %v593 = vpack.c.b16 %v537, %v530
    %v594 = vpack.c.b16 %v538, %v531
    %v595 = vpack.c.b16 %v539, %v532
    %v596 = vpack.c.b16 %v540, %v533
    %653 = vmatprep.subr.bf16.mxu0 %v542
    %654 = vmatpush1.bf16.msra.mxu0 %v541
    %655 = vmatprep.subr.bf16.mxu0 %v549
    %656 = vmatpush1.bf16.msra.mxu0 %v548
    %657 = vmatprep.subr.bf16.mxu0 %v556
    %658 = vmatpush1.bf16.msra.mxu0 %v555
    %659 = vmatprep.subr.bf16.mxu0 %v563
    %660 = vmatpush1.bf16.msra.mxu0 %v562
    %661 = vmatprep.subr.bf16.mxu0 %v570
    %662 = vmatpush1.bf16.msra.mxu0 %v569
    %663 = vmatprep.subr.bf16.mxu0 %v577
    %664 = vmatpush1.bf16.msra.mxu0 %v576
    %665 = vmatprep.subr.bf16.mxu0 %v584
    %666 = vmatpush1.bf16.msra.mxu0 %v583
    %667 = vmatprep.subr.bf16.mxu0 %v591
    %668 = vmatpush1.bf16.msra.mxu0 %v590
    %669 = vmatprep.subr.bf16.mxu0 0
    %670 = vmatpush1.bf16.msra.mxu0 0
    %671 = vmatprep.subr.bf16.mxu0 0
    %672 = vmatpush1.bf16.msra.mxu0 0
    %673 = vmatprep.subr.bf16.mxu0 0
    %674 = vmatpush1.bf16.msra.mxu0 0
    %675 = vmatprep.subr.bf16.mxu0 0
    %676 = vmatpush1.bf16.msra.mxu0 0
    %677 = vmatprep.subr.bf16.mxu0 0
    %678 = vmatpush1.bf16.msra.mxu0 0
    %679 = vmatprep.subr.bf16.mxu0 0
    %680 = vmatpush1.bf16.msra.mxu0 0
    %681 = vmatprep.subr.bf16.mxu0 0
    %682 = vmatpush1.bf16.msra.mxu0 0
    %683 = vmatprep.subr.bf16.mxu0 0
    %684 = vmatpush1.bf16.msra.mxu0 0
    %685 = vmatprep.mubr.bf16.mxu0 0
    %686 = vmatmul.mubr.bf16.gmra.mrb[0].mxu0 %v263
    %v687 = vpop.f32.mrb[0].mxu0
    %v688 = vadd.f32 %v333, %v687
    %v689 = vpop.f32.mrb[0].mxu0
    %v690 = vadd.f32 %v337, %v689
    %v691 = vpop.f32.mrb[0].mxu0
    %v692 = vadd.f32 %v333, %v691
    %v693 = vpop.f32.mrb[0].mxu0
    %v694 = vadd.f32 %v337, %v693
    %695 = vdwg.mxu0
    %696 = vmatprep.subr.bf16.mxu0 %v544
    %697 = vmatpush1.bf16.msra.mxu0 %v543
    %698 = vmatprep.subr.bf16.mxu0 %v551
    %699 = vmatpush1.bf16.msra.mxu0 %v550
    %700 = vmatprep.subr.bf16.mxu0 %v558
    %701 = vmatpush1.bf16.msra.mxu0 %v557
    %702 = vmatprep.subr.bf16.mxu0 %v565
    %703 = vmatpush1.bf16.msra.mxu0 %v564
    %704 = vmatprep.subr.bf16.mxu0 %v572
    %705 = vmatpush1.bf16.msra.mxu0 %v571
    %706 = vmatprep.subr.bf16.mxu0 %v579
    %707 = vmatpush1.bf16.msra.mxu0 %v578
    %708 = vmatprep.subr.bf16.mxu0 %v586
    %709 = vmatpush1.bf16.msra.mxu0 %v585
    %710 = vmatprep.subr.bf16.mxu0 %v593
    %711 = vmatpush1.bf16.msra.mxu0 %v592
    %712 = vmatprep.subr.bf16.mxu0 0
    %713 = vmatpush1.bf16.msra.mxu0 0
    %714 = vmatprep.subr.bf16.mxu0 0
    %715 = vmatpush1.bf16.msra.mxu0 0
    %716 = vmatprep.subr.bf16.mxu0 0
    %717 = vmatpush1.bf16.msra.mxu0 0
    %718 = vmatprep.subr.bf16.mxu0 0
    %719 = vmatpush1.bf16.msra.mxu0 0
    %720 = vmatprep.subr.bf16.mxu0 0
    %721 = vmatpush1.bf16.msra.mxu0 0
    %722 = vmatprep.subr.bf16.mxu0 0
    %723 = vmatpush1.bf16.msra.mxu0 0
    %724 = vmatprep.subr.bf16.mxu0 0
    %725 = vmatpush1.bf16.msra.mxu0 0
    %726 = vmatprep.subr.bf16.mxu0 0
    %727 = vmatpush1.bf16.msra.mxu0 0
    %728 = vmatprep.mubr.bf16.mxu0 0
    %729 = vmatmul.mubr.bf16.gmra.mrb[0].mxu0 %v263
    %v730 = vpop.f32.mrb[0].mxu0
    %v731 = vadd.f32 %v341, %v730
    %v732 = vpop.f32.mrb[0].mxu0
    %v733 = vadd.f32 %v345, %v732
    %v734 = vpop.f32.mrb[0].mxu0
    %v735 = vadd.f32 %v341, %v734
    %v736 = vpop.f32.mrb[0].mxu0
    %v737 = vadd.f32 %v345, %v736
    %738 = vdwg.mxu0
    %739 = vmatprep.subr.bf16.mxu0 %v546
    %740 = vmatpush1.bf16.msra.mxu0 %v545
    %741 = vmatprep.subr.bf16.mxu0 %v553
    %742 = vmatpush1.bf16.msra.mxu0 %v552
    %743 = vmatprep.subr.bf16.mxu0 %v560
    %744 = vmatpush1.bf16.msra.mxu0 %v559
    %745 = vmatprep.subr.bf16.mxu0 %v567
    %746 = vmatpush1.bf16.msra.mxu0 %v566
    %747 = vmatprep.subr.bf16.mxu0 %v574
    %748 = vmatpush1.bf16.msra.mxu0 %v573
    %749 = vmatprep.subr.bf16.mxu0 %v581
    %750 = vmatpush1.bf16.msra.mxu0 %v580
    %751 = vmatprep.subr.bf16.mxu0 %v588
    %752 = vmatpush1.bf16.msra.mxu0 %v587
    %753 = vmatprep.subr.bf16.mxu0 %v595
    %754 = vmatpush1.bf16.msra.mxu0 %v594
    %755 = vmatprep.subr.bf16.mxu0 0
    %756 = vmatpush1.bf16.msra.mxu0 0
    %757 = vmatprep.subr.bf16.mxu0 0
    %758 = vmatpush1.bf16.msra.mxu0 0
    %759 = vmatprep.subr.bf16.mxu0 0
    %760 = vmatpush1.bf16.msra.mxu0 0
    %761 = vmatprep.subr.bf16.mxu0 0
    %762 = vmatpush1.bf16.msra.mxu0 0
    %763 = vmatprep.subr.bf16.mxu0 0
    %764 = vmatpush1.bf16.msra.mxu0 0
    %765 = vmatprep.subr.bf16.mxu0 0
    %766 = vmatpush1.bf16.msra.mxu0 0
    %767 = vmatprep.subr.bf16.mxu0 0
    %768 = vmatpush1.bf16.msra.mxu0 0
    %769 = vmatprep.subr.bf16.mxu0 0
    %770 = vmatpush1.bf16.msra.mxu0 0
    %771 = vmatprep.mubr.bf16.mxu0 0
    %772 = vmatmul.mubr.bf16.gmra.mrb[0].mxu0 %v263
    %v773 = vpop.f32.mrb[0].mxu0
    %v774 = vadd.f32 %v349, %v773
    %v775 = vpop.f32.mrb[0].mxu0
    %v776 = vadd.f32 %v353, %v775
    %v777 = vpop.f32.mrb[0].mxu0
    %v778 = vadd.f32 %v349, %v777
    %v779 = vpop.f32.mrb[0].mxu0
    %v780 = vadd.f32 %v353, %v779
    %781 = vdwg.mxu0
    %782 = vmatprep.subr.bf16.mxu0 0
    %783 = vmatpush1.bf16.msra.mxu0 %v547
    %784 = vmatprep.subr.bf16.mxu0 0
    %785 = vmatpush1.bf16.msra.mxu0 %v554
    %786 = vmatprep.subr.bf16.mxu0 0
    %787 = vmatpush1.bf16.msra.mxu0 %v561
    %788 = vmatprep.subr.bf16.mxu0 0
    %789 = vmatpush1.bf16.msra.mxu0 %v568
    %790 = vmatprep.subr.bf16.mxu0 0
    %791 = vmatpush1.bf16.msra.mxu0 %v575
    %792 = vmatprep.subr.bf16.mxu0 0
    %793 = vmatpush1.bf16.msra.mxu0 %v582
    %794 = vmatprep.subr.bf16.mxu0 0
    %795 = vmatpush1.bf16.msra.mxu0 %v589
    %796 = vmatprep.subr.bf16.mxu0 0
    %797 = vmatpush1.bf16.msra.mxu0 %v596
    %798 = vmatprep.subr.bf16.mxu0 0
    %799 = vmatpush1.bf16.msra.mxu0 0
    %800 = vmatprep.subr.bf16.mxu0 0
    %801 = vmatpush1.bf16.msra.mxu0 0
    %802 = vmatprep.subr.bf16.mxu0 0
    %803 = vmatpush1.bf16.msra.mxu0 0
    %804 = vmatprep.subr.bf16.mxu0 0
    %805 = vmatpush1.bf16.msra.mxu0 0
    %806 = vmatprep.subr.bf16.mxu0 0
    %807 = vmatpush1.bf16.msra.mxu0 0
    %808 = vmatprep.subr.bf16.mxu0 0
    %809 = vmatpush1.bf16.msra.mxu0 0
    %810 = vmatprep.subr.bf16.mxu0 0
    %811 = vmatpush1.bf16.msra.mxu0 0
    %812 = vmatprep.subr.bf16.mxu0 0
    %813 = vmatpush1.bf16.msra.mxu0 0
    %814 = vmatprep.mubr.bf16.mxu0 0
    %815 = vmatmul.mubr.bf16.gmra.mrb[0].mxu0 %v263
    %v816 = vpop.f32.mrb[0].mxu0
    %v817 = vadd.f32 %v357, %v816
    %v818 = vpop.f32.mrb[0].mxu0
    %v819 = vpop.f32.mrb[0].mxu0
    %v820 = vadd.f32 %v357, %v819
    %v821 = vpop.f32.mrb[0].mxu0
    %822 = vdwg.mxu0
    %v823 = vtanh.pop %v688
    %v824 = vtanh.pop %v690
    %v825 = vtanh.pop %v731
    %v826 = vtanh.pop %v733
    %v827 = vtanh.pop %v774
    %v828 = vtanh.pop %v776
    %v829 = vtanh.pop %v817
    %v830 = vtanh.pop %v692
    %v831 = vtanh.pop %v694
    %v832 = vtanh.pop %v735
    %v833 = vtanh.pop %v737
    %v834 = vtanh.pop %v778
    %v835 = vtanh.pop %v780
    %v836 = vtanh.pop %v820
    %v837 = vpack.c.bf16 %v830, %v823
    %v838 = vpack.c.bf16 %v831, %v824
    %v839 = vpack.c.bf16 %v832, %v825
    %v840 = vpack.c.bf16 %v833, %v826
    %v841 = vpack.c.bf16 %v834, %v827
    %v842 = vpack.c.bf16 %v835, %v828
    %v843 = vpack.c.bf16 %v836, %v829
    %v851 = vunpack.c.l.b16 %v837
    %v852 = vunpack.c.l.b16 %v838
    %v853 = vunpack.c.l.b16 %v839
    %v854 = vunpack.c.l.b16 %v840
    %v855 = vunpack.c.l.b16 %v841
    %v856 = vunpack.c.l.b16 %v842
    %v857 = vunpack.c.l.b16 %v843
    %v858 = vunpack.c.h.b16 %v837
    %v859 = vunpack.c.h.b16 %v838
    %v860 = vunpack.c.h.b16 %v839
    %v861 = vunpack.c.h.b16 %v840
    %v862 = vunpack.c.h.b16 %v841
    %v863 = vunpack.c.h.b16 %v842
    %v864 = vunpack.c.h.b16 %v843
    %v865 = vpack.c.b16 %v852, %v851
    %v866 = vpack.c.b16 %v854, %v853
    %v867 = vpack.c.b16 %v856, %v855
    %v868 = vpack.c.b16 %v857, %v857
    %v869 = vpack.c.b16 %v859, %v858
    %v870 = vpack.c.b16 %v861, %v860
    %v871 = vpack.c.b16 %v863, %v862
    %v872 = vpack.c.b16 %v864, %v864
    %881 = vst [vmem:[#allocation10] sm:$0xff] %v865
    %882 = vst [vmem:[#allocation10 + $0x8] sm:$0xff] %v866
    %883 = vst [vmem:[#allocation10 + $0x10] sm:$0xff] %v867
    %884 = vst [vmem:[#allocation10 + $0x18] sm:$0xf] %v868
    %885 = vst [vmem:[#allocation10 + $0x1c] sm:$0xff] %v869
    %886 = vst [vmem:[#allocation10 + $0x24] sm:$0xff] %v870
    %887 = vst [vmem:[#allocation10 + $0x2c] sm:$0xff] %v871
    %888 = vst [vmem:[#allocation10 + $0x34] sm:$0xf] %v872
    // Predicated region
    $region46: #{tpu_custom_call.1} parent=1 // pred_check
      _
    $region47: #{tpu_custom_call.1} parent=1 // pred_check_branch
      %890 = sbr.rel (0) target = $region49
    $region48: #{tpu_custom_call.1} parent=1 // pred_region
      %s892 = ssub.s32 896, 896
      %893 = vsyncadd [#allocation4], %s892
      %s894 = sshll.u32 [#allocation10], 4
      %s895 = int_to_ptr.vmem [resolvable:$true] %s894
      %900 = dma.vmem_to_hbm [thread:$0]  %s895, 896, %s7, [#allocation4], 448, 448, 28
    $region49: #{tpu_custom_call.1} parent=1 // pred_fallthru
      _
    // Predicated region
    $region50: #{tpu_custom_call.1} parent=1 // pred_check
      _
    $region51: #{tpu_custom_call.1} parent=1 // pred_check_branch
      %902 = sbr.rel (0) target = $region53
    $region52: #{tpu_custom_call.1} parent=1 // pred_region
      %903 = dma.done [#allocation4], 896
    $region53: #{tpu_custom_call.1} parent=1 // pred_fallthru
      _
    %904 = vsyncpa [#allocation3], 1
    %905 = vsyncpa [#allocation6], 1
    %906 = vsyncpa [#allocation9], 1
    %907 = vsyncpa [#allocation4], 1

</llo_original>
